<compile_context>
chip_gen: v6e
topology: v6e:2x2x1
jax: 0.10.0
libtpu: 0.0.40
codegen_flags: <defaults>
</compile_context>

<pallas_src>
import functools

import jax
import jax.numpy as jnp
from jax.experimental import pallas as pl
from jax.experimental.pallas import tpu as pltpu

LANES = 128
SUBLANES = 8
MAX_BLOCK_ROWS = 2048  # 2048x128 f32 = 1 MiB per input block


def _focal_loss_kernel(x_ref, t_ref, o_ref, acc_ref, *,
                       gamma, inv_count, tail_valid, block_rows,
                       binary_targets):
    i = pl.program_id(0)
    n_steps = pl.num_programs(0)

    @pl.when(i == 0)
    def _():
        acc_ref[...] = jnp.zeros_like(acc_ref)

    x = x_ref[...].astype(jnp.float32)
    t = t_ref[...].astype(jnp.float32)

    # loss = x - x*t + softplus(-x),  stable softplus(v) = max(v,0) + log1p(exp(-|v|))
    log1p_term = jnp.log1p(jnp.exp(-jnp.abs(x)))
    sp_negx = jnp.maximum(-x, 0.0) + log1p_term
    loss = x - x * t + sp_negx

    # Modulating factor exp(gamma * logsigmoid(-x*(2t-1))) = exp(-gamma * softplus(x*(2t-1)))
    if binary_targets:
        # For t in {0,1}: softplus(x*(2t-1)) == softplus(-x) + t*x (exact identity),
        # reusing sp_negx -> saves one exp + one log1p per element (EUP).
        sp_z = sp_negx + t * x
    else:
        z = x * (t * 2.0 - 1.0)
        sp_z = jnp.maximum(z, 0.0) + jnp.log1p(jnp.exp(-jnp.abs(z)))
    loss = jnp.exp(-sp_z * gamma) * loss

    def reduce_to_acc(contrib):
        # (block_rows,128) -> (block_rows//8, 8, 128): every (8,128) tile stays
        # intact, so the sum over axis 0 is pure vreg-wise VPU adds into the
        # single-vreg accumulator.
        acc_ref[...] += contrib.reshape(
            block_rows // SUBLANES, SUBLANES, LANES).sum(axis=0)

    @pl.when(i < n_steps - 1)
    def _():
        # Steady-state blocks are fully valid: no masking work.
        reduce_to_acc(loss)

    @pl.when(i == n_steps - 1)
    def _():
        # Only the final block can contain the padded / out-of-bounds tail.
        # Block-local indices (< block_rows*128) -> no int32 overflow risk.
        row_ids = jax.lax.broadcasted_iota(jnp.int32, loss.shape, 0)
        lane_ids = jax.lax.broadcasted_iota(jnp.int32, loss.shape, 1)
        rel_idx = row_ids * LANES + lane_ids
        valid = rel_idx < tail_valid
        reduce_to_acc(jnp.where(valid, loss, 0.0))
        # Cross-lane/sublane reduce + scale + scalar store only once.
        o_ref[...] = jnp.full((1, 1), jnp.sum(acc_ref[...]) * inv_count,
                              dtype=jnp.float32)


def focal_loss(inputs, targets, gamma, *, binary_targets=False):
    if inputs.shape != targets.shape:
        raise ValueError(
            "Target size ({}) must be the same as input size ({})".format(
                targets.shape, inputs.shape
            )
        )

    n_valid = int(inputs.size)
    x_flat = jnp.ravel(inputs)
    t_flat = jnp.ravel(targets)

    if binary_targets:
        # 0/1 targets are exactly representable in bf16: halves target HBM bytes.
        t_flat = t_flat.astype(jnp.bfloat16)

    # Pad to a multiple of 8*128 so the [rows, 128] slab has rows % 8 == 0
    # (keeps every block a whole number of vregs for the accumulator fold).
    chunk = SUBLANES * LANES
    n_padded = ((n_valid + chunk - 1) // chunk) * chunk
    pad = n_padded - n_valid
    if pad:
        x_flat = jnp.pad(x_flat, (0, pad))
        t_flat = jnp.pad(t_flat, (0, pad))

    rows = n_padded // LANES
    x2d = x_flat.reshape(rows, LANES)
    t2d = t_flat.reshape(rows, LANES)

    # Single grid step for small inputs; 2048-row tiles for large ones.
    block_rows = rows if rows <= MAX_BLOCK_ROWS else MAX_BLOCK_ROWS
    grid_steps = pl.cdiv(rows, block_rows)
    # Number of valid elements inside the last block (static Python int).
    tail_valid = n_valid - (grid_steps - 1) * block_rows * LANES

    kernel = functools.partial(
        _focal_loss_kernel,
        gamma=float(gamma),
        inv_count=1.0 / float(n_valid),
        tail_valid=int(tail_valid),
        block_rows=block_rows,
        binary_targets=binary_targets,
    )

    x_spec = pl.BlockSpec((block_rows, LANES), lambda i: (i, 0))
    t_spec = pl.BlockSpec((block_rows, LANES), lambda i: (i, 0))
    out = pl.pallas_call(
        kernel,
        out_shape=jax.ShapeDtypeStruct((1, 1), jnp.float32),
        grid_spec=pltpu.PrefetchScalarGridSpec(
            num_scalar_prefetch=0,
            grid=(grid_steps,),
            in_specs=[x_spec, t_spec],
            out_specs=pl.BlockSpec((1, 1), lambda i: (0, 0)),
            scratch_shapes=[pltpu.VMEM((SUBLANES, LANES), jnp.float32)],
        ),
        compiler_params=pltpu.CompilerParams(
            dimension_semantics=("arbitrary",)
        ),
    )(x2d, t2d)
    return out[0, 0]


def focal_loss_ref(inputs, targets, gamma):
    x = inputs.astype(jnp.float32)
    t = targets.astype(jnp.float32)
    max_val = jnp.maximum(-x, 0.0)
    loss = x - x * t + max_val + jnp.log(jnp.exp(-max_val) + jnp.exp(-x - max_val))
    invprobs = jax.nn.log_sigmoid(-x * (t * 2.0 - 1.0))
    loss = jnp.exp(invprobs * gamma) * loss
    return jnp.mean(loss)


if __name__ == "__main__":
    key = jax.random.PRNGKey(0)
    k1, k2 = jax.random.split(key)

    gamma = 2.0  # deterministic module parameter (FocalLoss(gamma))
    # NCHW-shaped logits and binary targets, same shape per module contract.
    x = jax.random.normal(k1, (2, 4, 16, 16), dtype=jnp.float32)
    t = (jax.random.uniform(k2, (2, 4, 16, 16)) > 0.5).astype(jnp.float32)

    ref = focal_loss_ref(x, t, gamma)

    # Fast path: binary-target specialization (fewer EUP ops, bf16 targets).
    out = focal_loss(x, t, gamma, binary_targets=True)
    out = jax.block_until_ready(out)
    assert jnp.allclose(out, ref, rtol=1e-5, atol=1e-5), (out, ref)

    # General (soft-target-safe) path, identical semantics to the module.
    out_gen = focal_loss(x, t, gamma)
    out_gen = jax.block_until_ready(out_gen)
    assert jnp.allclose(out_gen, ref, rtol=1e-5, atol=1e-5), (out_gen, ref)

    print("KERNEL_OK")
</pallas_src>

<mosaic_0001>
module attributes {stable_mosaic.version = 11 : i64} {
  func.func @_focal_loss_kernel(%arg0: i32, %arg1: memref<16x128xf32, #tpu.memory_space<vmem>>, %arg2: memref<16x128xbf16, #tpu.memory_space<vmem>>, %arg3: memref<1x1xf32, #tpu.memory_space<vmem>>, %arg4: memref<8x128xf32, #tpu.memory_space<vmem>>) attributes {dimension_semantics = [#tpu.dimension_semantics<arbitrary>], iteration_bounds = array<i64: 1>, scalar_prefetch = 0 : i64, scratch_operands = 1 : i64, tpu.core_type = #tpu.core_type<tc>, window_params = [{transform_indices = @transform_0, window_bounds = array<i64: 16, 128>}, {transform_indices = @transform_1, window_bounds = array<i64: 16, 128>}, {pipeline_mode = #tpu.pipeline_mode<synchronous>, transform_indices = @transform_2, window_bounds = array<i64: 1, 1>}]} {
    %c0_i32 = arith.constant 0 : i32
    %0 = arith.cmpi eq, %arg0, %c0_i32 : i32
    %1 = arith.extui %0 : i1 to i32
    %c0_i32_0 = arith.constant 0 : i32
    %2 = arith.cmpi ne, %1, %c0_i32_0 : i32
    scf.if %2 {
      %cst_12 = arith.constant 0.000000e+00 : f32
      %33 = vector.broadcast %cst_12 : f32 to vector<8x128xf32>
      %c0_13 = arith.constant 0 : index
      %c0_14 = arith.constant 0 : index
      %34 = vector.load %arg4[%c0_13, %c0_14] : memref<8x128xf32, #tpu.memory_space<vmem>>, vector<8x128xf32>
      tpu.vector_store %arg4[%c0_13, %c0_14], %33 {strides = array<i32>} : memref<8x128xf32, #tpu.memory_space<vmem>>, vector<8x128xf32>,
    } else {
    }
    %c0 = arith.constant 0 : index
    %c0_1 = arith.constant 0 : index
    %3 = vector.load %arg1[%c0, %c0_1] : memref<16x128xf32, #tpu.memory_space<vmem>>, vector<16x128xf32>
    %c0_2 = arith.constant 0 : index
    %c0_3 = arith.constant 0 : index
    %4 = vector.load %arg2[%c0_2, %c0_3] : memref<16x128xbf16, #tpu.memory_space<vmem>>, vector<16x128xbf16>
    %5 = arith.extf %4 : vector<16x128xbf16> to vector<16x128xf32>
    %6 = math.absf %3 : vector<16x128xf32>
    %cst = arith.constant 0.000000e+00 : f32
    %7 = vector.broadcast %cst : f32 to vector<16x128xf32>
    %8 = arith.subf %7, %6 : vector<16x128xf32>
    %9 = math.exp %8 : vector<16x128xf32>
    %10 = math.log1p %9 : vector<16x128xf32>
    %cst_4 = arith.constant 0.000000e+00 : f32
    %11 = vector.broadcast %cst_4 : f32 to vector<16x128xf32>
    %12 = arith.subf %11, %3 : vector<16x128xf32>
    %cst_5 = arith.constant 0.000000e+00 : f32
    %13 = vector.broadcast %cst_5 : f32 to vector<16x128xf32>
    %14 = arith.maximumf %12, %13 : vector<16x128xf32>
    %15 = arith.addf %14, %10 : vector<16x128xf32>
    %16 = arith.mulf %3, %5 : vector<16x128xf32>
    %17 = arith.subf %3, %16 : vector<16x128xf32>
    %18 = arith.addf %17, %15 : vector<16x128xf32>
    %19 = arith.mulf %5, %3 : vector<16x128xf32>
    %20 = arith.addf %15, %19 : vector<16x128xf32>
    %cst_6 = arith.constant 0.000000e+00 : f32
    %21 = vector.broadcast %cst_6 : f32 to vector<16x128xf32>
    %22 = arith.subf %21, %20 : vector<16x128xf32>
    %cst_7 = arith.constant 2.000000e+00 : f32
    %23 = vector.broadcast %cst_7 : f32 to vector<16x128xf32>
    %24 = arith.mulf %22, %23 : vector<16x128xf32>
    %25 = math.exp %24 : vector<16x128xf32>
    %26 = arith.mulf %25, %18 : vector<16x128xf32>
    %c0_i32_8 = arith.constant 0 : i32
    %27 = arith.cmpi slt, %arg0, %c0_i32_8 : i32
    %28 = arith.extui %27 : i1 to i32
    %c0_i32_9 = arith.constant 0 : i32
    %29 = arith.cmpi ne, %28, %c0_i32_9 : i32
    scf.if %29 {
      %c0_12 = arith.constant 0 : index
      %c0_13 = arith.constant 0 : index
      %33 = vector.load %arg4[%c0_12, %c0_13] : memref<8x128xf32, #tpu.memory_space<vmem>>, vector<8x128xf32>
      %34 = vector.shape_cast %26 : vector<16x128xf32> to vector<2x8x128xf32>
      %cst_14 = arith.constant dense<0.000000e+00> : vector<8x128xf32>
      %35 = vector.multi_reduction <add>, %34, %cst_14 [0] : vector<2x8x128xf32> to vector<8x128xf32>
      %36 = arith.addf %33, %35 : vector<8x128xf32>
      %c0_15 = arith.constant 0 : index
      %c0_16 = arith.constant 0 : index
      %37 = vector.load %arg4[%c0_15, %c0_16] : memref<8x128xf32, #tpu.memory_space<vmem>>, vector<8x128xf32>
      tpu.vector_store %arg4[%c0_15, %c0_16], %36 {strides = array<i32>} : memref<8x128xf32, #tpu.memory_space<vmem>>, vector<8x128xf32>,
    } else {
    }
    %c0_i32_10 = arith.constant 0 : i32
    %30 = arith.cmpi eq, %arg0, %c0_i32_10 : i32
    %31 = arith.extui %30 : i1 to i32
    %c0_i32_11 = arith.constant 0 : i32
    %32 = arith.cmpi ne, %31, %c0_i32_11 : i32
    scf.if %32 {
      %33 = tpu.iota {dimensions = array<i32: 0>} : vector<16x128xi32>
      %34 = tpu.iota {dimensions = array<i32: 1>} : vector<16x128xi32>
      %c128_i32 = arith.constant 128 : i32
      %35 = vector.broadcast %c128_i32 : i32 to vector<16x128xi32>
      %36 = arith.muli %33, %35 : vector<16x128xi32>
      %37 = arith.addi %36, %34 : vector<16x128xi32>
      %c2048_i32 = arith.constant 2048 : i32
      %38 = vector.broadcast %c2048_i32 : i32 to vector<16x128xi32>
      %39 = arith.cmpi slt, %37, %38 : vector<16x128xi32>
      %cst_12 = arith.constant 0.000000e+00 : f32
      %40 = vector.broadcast %cst_12 : f32 to vector<16x128xf32>
      %41 = arith.select %39, %26, %40 : vector<16x128xi1>, vector<16x128xf32>
      %c0_13 = arith.constant 0 : index
      %c0_14 = arith.constant 0 : index
      %42 = vector.load %arg4[%c0_13, %c0_14] : memref<8x128xf32, #tpu.memory_space<vmem>>, vector<8x128xf32>
      %43 = vector.shape_cast %41 : vector<16x128xf32> to vector<2x8x128xf32>
      %cst_15 = arith.constant dense<0.000000e+00> : vector<8x128xf32>
      %44 = vector.multi_reduction <add>, %43, %cst_15 [0] : vector<2x8x128xf32> to vector<8x128xf32>
      %45 = arith.addf %42, %44 : vector<8x128xf32>
      %c0_16 = arith.constant 0 : index
      %c0_17 = arith.constant 0 : index
      %46 = vector.load %arg4[%c0_16, %c0_17] : memref<8x128xf32, #tpu.memory_space<vmem>>, vector<8x128xf32>
      tpu.vector_store %arg4[%c0_16, %c0_17], %45 {strides = array<i32>} : memref<8x128xf32, #tpu.memory_space<vmem>>, vector<8x128xf32>,
      %c0_18 = arith.constant 0 : index
      %c0_19 = arith.constant 0 : index
      %47 = vector.load %arg4[%c0_18, %c0_19] : memref<8x128xf32, #tpu.memory_space<vmem>>, vector<8x128xf32>
      %48 = vector.shape_cast %47 : vector<8x128xf32> to vector<1x8x128xf32>
      %cst_20 = arith.constant dense<0.000000e+00> : vector<1xf32>
      %49 = vector.multi_reduction <add>, %48, %cst_20 [1, 2] : vector<1x8x128xf32> to vector<1xf32>
      %50 = vector.shape_cast %49 : vector<1xf32> to vector<1x1x1xf32>
      %51 = vector.extract %50[0, 0, 0] : f32 from vector<1x1x1xf32>
      %cst_21 = arith.constant 4.8828125E-4 : f32
      %52 = arith.mulf %51, %cst_21 : f32
      %53 = vector.broadcast %52 : f32 to vector<1x1xf32>
      %c0_22 = arith.constant 0 : index
      %c0_23 = arith.constant 0 : index
      %54 = vector.load %arg3[%c0_22, %c0_23] : memref<1x1xf32, #tpu.memory_space<vmem>>, vector<1x1xf32>
      tpu.vector_store %arg3[%c0_22, %c0_23], %53 {strides = array<i32>} : memref<1x1xf32, #tpu.memory_space<vmem>>, vector<1x1xf32>,
    } else {
    }
    return
  }
  func.func @transform_0(%arg0: i32) -> (i32, i32) {
    %c0_i32 = arith.constant 0 : i32
    %c0_i32_0 = arith.constant 0 : i32
    return %arg0, %c0_i32 : i32, i32
  }
  func.func @transform_1(%arg0: i32) -> (i32, i32) {
    %c0_i32 = arith.constant 0 : i32
    %c0_i32_0 = arith.constant 0 : i32
    return %arg0, %c0_i32 : i32, i32
  }
  func.func @transform_2(%arg0: i32) -> (i32, i32) {
    %c0_i32 = arith.constant 0 : i32
    %c0_i32_0 = arith.constant 0 : i32
    %c0_i32_1 = arith.constant 0 : i32
    return %c0_i32, %c0_i32_0 : i32, i32
  }
}

</mosaic_0001>

<llo_original>
// kernel: tpu_custom_call.1
$region0: #{tpu_custom_call.1}
  #allocation0 [shape = 'u32[]', space=smem, size = 0x4, offset = 0x4, fixed_abs, tag = 'smem constant byte address 0x4 - core index']
  #allocation1 [shape = 'u32[144,128]{1,0:T(1,128)}', space=vmem, size = 0x12000, scoped, tag = 'internal scratch']
  #allocation2 [shape = 'f32[8,128]{1,0:T(8,128)}', space=vmem, size = 0x1000, scoped, tag = 'scratch operand']
  %s0 = inlined_call_operand.hbm [shape: f32[16,128], index: 0, kind: input, shape index: {}]
  %s1 = inlined_call_operand.hbm [shape: bf16[16,128], index: 1, kind: input, shape index: {}]
  %s2 = inlined_call_operand.hbm [shape: f32[1,1], index: 2, kind: output, shape index: {}]
  %s3 = sld [smem:[#allocation0]]
  $region38: #{tpu_custom_call.1} parent=0
    _
  %s5 = ssub.s32 1, %s3
  %s6 = scalar_select 0, %s5, %s3
  $region1: #{tpu_custom_call.1} parent=0
    #allocation3 [shape = 'u8[8192]{0}', space=vmem, size = 0x2000, scoped, tag = 'input window, operand 0, single buffered']
    #allocation4 [shape = 's32[1]{0}', space=sflag, size = 0x4, scoped, tag = 'scoped memory for tpu_custom_call.1']
    #allocation5 [shape = 's32[1]{0}', space=sflag, size = 0x4, scoped, tag = 'scoped memory for tpu_custom_call.1']
    #allocation6 [shape = 'u8[4096]{0}', space=vmem, size = 0x1000, scoped, tag = 'input window, operand 1, single buffered']
    #allocation7 [shape = 's32[1]{0}', space=sflag, size = 0x4, scoped, tag = 'scoped memory for tpu_custom_call.1']
    #allocation8 [shape = 'u8[512]{0}', space=vmem, size = 0x400, scoped, tag = 'output window, operand 0, single buffered']
    %7 = vsyncpa [#allocation4], 0
    %8 = vsyncpa [#allocation7], 0
    %9 = vsyncpa [#allocation5], 0
    // Predicated region
    $region2: #{tpu_custom_call.1} parent=1 // pred_check
      _
    $region3: #{tpu_custom_call.1} parent=1 // pred_check_branch
      %11 = sbr.rel (0) target = $region5
    $region4: #{tpu_custom_call.1} parent=1 // pred_region
      %s13 = ssub.s32 256, 256
      %14 = vsyncadd [#allocation4], %s13
      %s15 = sshll.u32 [#allocation3], 4
      %s16 = int_to_ptr.vmem [resolvable:$true] %s15
      %21 = dma.hbm_to_vmem [thread:$0]  %s0, 256, %s16, [#allocation4], 128, 128, 8
    $region5: #{tpu_custom_call.1} parent=1 // pred_fallthru
      _
    // Predicated region
    $region6: #{tpu_custom_call.1} parent=1 // pred_check
      _
    $region7: #{tpu_custom_call.1} parent=1 // pred_check_branch
      %23 = sbr.rel (0) target = $region9
    $region8: #{tpu_custom_call.1} parent=1 // pred_region
      %s25 = ssub.s32 128, 128
      %26 = vsyncadd [#allocation7], %s25
      %s27 = sshll.u32 [#allocation6], 4
      %s28 = int_to_ptr.vmem [resolvable:$true] %s27
      %33 = dma.hbm_to_vmem [thread:$0]  %s1, 128, %s28, [#allocation7], 64, 64, 4
    $region9: #{tpu_custom_call.1} parent=1 // pred_fallthru
      _
    // Predicated region
    $region10: #{tpu_custom_call.1} parent=1 // pred_check
      _
    $region11: #{tpu_custom_call.1} parent=1 // pred_check_branch
      %35 = sbr.rel (0) target = $region13
    $region12: #{tpu_custom_call.1} parent=1 // pred_region
      %36 = dma.done [#allocation4], 256
    $region13: #{tpu_custom_call.1} parent=1 // pred_fallthru
      _
    // Predicated region
    $region14: #{tpu_custom_call.1} parent=1 // pred_check
      _
    $region15: #{tpu_custom_call.1} parent=1 // pred_check_branch
      %38 = sbr.rel (0) target = $region17
    $region16: #{tpu_custom_call.1} parent=1 // pred_region
      %39 = dma.done [#allocation7], 128
    $region17: #{tpu_custom_call.1} parent=1 // pred_fallthru
      _
    %p40 = scmp.eq.s32.totalorder 0, 0
    // Predicated region
    $region18: #{tpu_custom_call.1} parent=1 // pred_check
      %p41 = pneg %p40
    $region19: #{tpu_custom_call.1} parent=1 // pred_check_branch
      %43 = sbr.rel (%p41) target = $region21
    $region20: #{tpu_custom_call.1} parent=1 // pred_region
      %44 = vst [vmem:[#allocation2] sm:$0xff] 0.0
    $region21: #{tpu_custom_call.1} parent=1 // pred_fallthru
      _
    %v45 = vld [vmem:[#allocation3] sm:$0xff]
    %v46 = vld [vmem:[#allocation3 + $0x8] sm:$0xff]
    %v47 = vld [vmem:[#allocation6] sm:$0xf]
    %v48 = vld [vmem:[#allocation6 + $0x4] sm:$0xf]
    %v49 = vunpack.c.l.bf16 %v47
    %v50 = vunpack.c.l.bf16 %v48
    %v51 = vand.u32 2147483647, %v45
    %v52 = vand.u32 2147483647, %v46
    %v53 = vsub.f32 0.0, %v51
    %v54 = vsub.f32 0.0, %v52
    %v55 = vmul.f32 %v53, 1.442695
    %v56 = vpow.pop %v55
    %v57 = vmul.f32 %v54, 1.442695
    %v58 = vpow.pop %v57
    %v59 = vadd.f32 %v56, 1.0
    %v60 = vlog2.pop %v59
    %v61 = vmul.f32 %v60, 0.6931472
    %v62 = vmul.f32 -0.5, %v56
    %v63 = vadd.f32 %v62, 1.0
    %v64 = vmul.f32 %v63, %v56
    %v65 = vand.u32 2147483647, %v56
    %vm66 = vcmp.lt.f32.partialorder %v65, 0.0004427343
    %v67 = vsel %vm66, %v64, %v61
    %v68 = vadd.f32 %v58, 1.0
    %v69 = vlog2.pop %v68
    %v70 = vmul.f32 %v69, 0.6931472
    %v71 = vmul.f32 -0.5, %v58
    %v72 = vadd.f32 %v71, 1.0
    %v73 = vmul.f32 %v72, %v58
    %v74 = vand.u32 2147483647, %v58
    %vm75 = vcmp.lt.f32.partialorder %v74, 0.0004427343
    %v76 = vsel %vm75, %v73, %v70
    %v77 = vsub.f32 0.0, %v45
    %v78 = vsub.f32 0.0, %v46
    %v79 = vmax.f32 %v77, 0.0
    %v80 = vmax.f32 %v78, 0.0
    %v81 = vadd.f32 %v79, %v67
    %v82 = vadd.f32 %v80, %v76
    %v83 = vmul.f32 %v45, %v49
    %v84 = vmul.f32 %v46, %v50
    %v85 = vsub.f32 %v45, %v83
    %v86 = vsub.f32 %v46, %v84
    %v87 = vadd.f32 %v85, %v81
    %v88 = vadd.f32 %v86, %v82
    %v89 = vadd.f32 %v81, %v83
    %v90 = vadd.f32 %v82, %v84
    %v91 = vsub.f32 0.0, %v89
    %v92 = vsub.f32 0.0, %v90
    %v93 = vmul.f32 %v91, 2.0
    %v94 = vmul.f32 %v92, 2.0
    %v95 = vmul.f32 %v93, 1.442695
    %v96 = vpow.pop %v95
    %v97 = vmul.f32 %v94, 1.442695
    %v98 = vpow.pop %v97
    %v99 = vmul.f32 %v96, %v87
    %v100 = vmul.f32 %v98, %v88
    %p101 = scmp.lt.s32.totalorder 0, 0
    // Predicated region
    $region22: #{tpu_custom_call.1} parent=1 // pred_check
      %p102 = pneg %p101
    $region23: #{tpu_custom_call.1} parent=1 // pred_check_branch
      %104 = sbr.rel (%p102) target = $region25
    $region24: #{tpu_custom_call.1} parent=1 // pred_region
      %v105 = vld [vmem:[#allocation2] sm:$0xff]
      %v106 = vadd.f32 %v99, %v100
      %v107 = vadd.f32 %v105, %v106
      %108 = vst [vmem:[#allocation2] sm:$0xff] %v107
    $region25: #{tpu_custom_call.1} parent=1 // pred_fallthru
      _
    // Predicated region
    $region26: #{tpu_custom_call.1} parent=1 // pred_check
      %p109 = pneg %p40
    $region27: #{tpu_custom_call.1} parent=1 // pred_check_branch
      %111 = sbr.rel (%p109) target = $region29
    $region28: #{tpu_custom_call.1} parent=1 // pred_region
      %v112 = vlaneseq
      %v113 = vshrl.u32 %v112, 7
      %v114 = vadd.s32 %v113, 8
      %v115 = vlaneseq
      %v116 = vand.u32 %v115, 127
      %v117 = vmul.u32 %v113, 128
      %v118 = vmul.u32 %v114, 128
      %v119 = vadd.s32 %v117, %v116
      %v120 = vadd.s32 %v118, %v116
      %vm121 = vcmp.lt.s32.totalorder %v119, 2048
      %vm122 = vcmp.lt.s32.totalorder %v120, 2048
      %v123 = vsel %vm121, %v99, 0.0
      %v124 = vsel %vm122, %v100, 0.0
      %v125 = vld [vmem:[#allocation2] sm:$0xff]
      %v126 = vadd.f32 %v123, %v124
      %v127 = vadd.f32 %v125, %v126
      %128 = vst [vmem:[#allocation2] sm:$0xff] %v127
      %v129 = vld [vmem:[#allocation2] sm:$0xff]
      %130 = vadd.xlane.f32.xlu0 %v129
      %v131 = vpop.xlane.xlu0 %130
      %v132 = vrot.slane %v131, 4
      %v133 = vadd.f32 %v131, %v132
      %v134 = vrot.slane %v133, 2
      %v135 = vadd.f32 %v133, %v134
      %v136 = vrot.slane %v135, 1
      %v137 = vadd.f32 %v135, %v136
      %s138 = vtos %v137
      %s139 = smul.f32 %s138, 0.00048828125
      %v140 = vstv %s139
      %vm141 = vcmask 0
      %142 = vst.msk [vmem:[#allocation8] sm:$0x1] %vm141, %v140
    $region29: #{tpu_custom_call.1} parent=1 // pred_fallthru
      _
    // Predicated region
    $region30: #{tpu_custom_call.1} parent=1 // pred_check
      _
    $region31: #{tpu_custom_call.1} parent=1 // pred_check_branch
      %144 = sbr.rel (0) target = $region33
    $region32: #{tpu_custom_call.1} parent=1 // pred_region
      %s146 = ssub.s32 16, 16
      %147 = vsyncadd [#allocation5], %s146
      %s149 = sshll.u32 [#allocation8], 4
      %s150 = int_to_ptr.vmem [resolvable:$true] %s149
      %152 = dma.vmem_to_hbm [thread:$0]  %s150, 16, %s2, [#allocation5]
    $region33: #{tpu_custom_call.1} parent=1 // pred_fallthru
      _
    // Predicated region
    $region34: #{tpu_custom_call.1} parent=1 // pred_check
      _
    $region35: #{tpu_custom_call.1} parent=1 // pred_check_branch
      %154 = sbr.rel (0) target = $region37
    $region36: #{tpu_custom_call.1} parent=1 // pred_region
      %155 = dma.done [#allocation5], 16
    $region37: #{tpu_custom_call.1} parent=1 // pred_fallthru
      _
    %156 = vsyncpa [#allocation4], 1
    %157 = vsyncpa [#allocation7], 1
    %158 = vsyncpa [#allocation5], 1

</llo_original>
